<compile_context>
chip_gen: v5e
topology: v5e:2x2
jax: 0.10.0
libtpu: 0.0.40
codegen_flags: <defaults>
</compile_context>

<pallas_src>
import functools

import jax
import jax.numpy as jnp
from jax import lax
from jax.experimental import pallas as pl
from jax.experimental.pallas import tpu as pltpu


def _online_norm1d_kernel(x_ref, m_ref, var_ref,
                          out_ref, m_out_ref, var_out_ref,
                          mu_sc, var_sc,
                          *, afwd: float, eps: float, unroll: int):
    """One grid step: (batch_block, feat_tile) chunk of the per-feature scan."""
    i = pl.program_id(1)                      # batch-chunk index (innermost)

    # First batch chunk of this feature column: seed the carry from the
    # running buffers.
    @pl.when(i == 0)
    def _init():
        mu_sc[...] = m_ref[...]
        var_sc[...] = var_ref[...]

    nb = x_ref.shape[0]

    # Hoisted loop-invariant scalars (become splat constants, not re-broadcast
    # per iteration).
    a = afwd
    b = 1.0 - afwd
    c = afwd * (1.0 - afwd)

    def body(t, carry):
        mu, var = carry                                  # (1, tl) f32 each
        xt = x_ref[pl.ds(t, 1), :]                       # (1, tl)
        diff = xt - mu
        out_ref[pl.ds(t, 1), :] = (diff * lax.rsqrt(var + eps)).astype(
            out_ref.dtype)
        var_new = a * var + c * (diff * diff)
        mu_new = a * mu + b * xt
        return (mu_new, var_new)

    mu_f, var_f = lax.fori_loop(0, nb, body, (mu_sc[...], var_sc[...]),
                                unroll=unroll)

    # Carry the running stats to the next batch chunk of this feature column.
    mu_sc[...] = mu_f
    var_sc[...] = var_f

    # Last batch chunk: publish the updated running buffers.
    @pl.when(i == pl.num_programs(1) - 1)
    def _finalize():
        m_out_ref[...] = mu_sc[...]
        var_out_ref[...] = var_sc[...]


def online_norm1d_fwd(x, m, var, *, alpha_fwd=0.999, eps=1e-5,
                      feat_tile=512, batch_block=256, unroll=8):
    """Training-mode forward of Norm1d.

    Args:
      x:   (N, L) float input.
      m:   (L,)   float32 running mean buffer.
      var: (L,)   float32 running variance buffer.
    Returns:
      out (N, L), new_m (L,), new_var (L,)
    """
    N, L = x.shape

    # Feature-tile width: wide (lane-dense) tiles, but keep >= 2 tiles when
    # possible so both v7x TensorCores get work on the "parallel" axis.
    tl = min(feat_tile, L)
    if L // tl < 2 and L >= 256 and L % 256 == 0:
        tl = L // 2
    assert L % tl == 0, "feature dim must be divisible by the feature tile"

    # Batch-chunk height: stream N in chunks (pipelined HBM <-> VMEM).
    nb = min(batch_block, N)
    assert N % nb == 0, "batch dim must be divisible by the batch block"
    unroll = max(1, min(int(unroll), nb))

    m2 = m.reshape(1, L).astype(jnp.float32)
    v2 = var.reshape(1, L).astype(jnp.float32)

    kernel = functools.partial(_online_norm1d_kernel,
                               afwd=float(alpha_fwd), eps=float(eps),
                               unroll=unroll)

    # Rough VMEM need: double-buffered x-in + out blocks (+ small stat blocks
    # and scratch).  Keep the scoped limit generous but <= v7x physical VMEM.
    block_bytes = nb * tl * 4
    vmem_limit = int(max(32 * 1024 * 1024,
                         min(6 * block_bytes + (4 << 20), 64 * 1024 * 1024)))

    grid = (L // tl, N // nb)   # (feature tiles [parallel], batch chunks [arbitrary])

    out, m_new, var_new = pl.pallas_call(
        kernel,
        out_shape=(
            jax.ShapeDtypeStruct((N, L), x.dtype),
            jax.ShapeDtypeStruct((1, L), jnp.float32),
            jax.ShapeDtypeStruct((1, L), jnp.float32),
        ),
        grid_spec=pltpu.PrefetchScalarGridSpec(
            num_scalar_prefetch=0,
            grid=grid,
            in_specs=[
                pl.BlockSpec((nb, tl), lambda j, i: (i, j)),   # x
                pl.BlockSpec((1, tl), lambda j, i: (0, j)),    # running mean
                pl.BlockSpec((1, tl), lambda j, i: (0, j)),    # running var
            ],
            out_specs=[
                pl.BlockSpec((nb, tl), lambda j, i: (i, j)),   # out
                pl.BlockSpec((1, tl), lambda j, i: (0, j)),    # new mean
                pl.BlockSpec((1, tl), lambda j, i: (0, j)),    # new var
            ],
            scratch_shapes=[
                pltpu.VMEM((1, tl), jnp.float32),   # mu carry
                pltpu.VMEM((1, tl), jnp.float32),   # var carry
            ],
        ),
        # Running-stat buffers updated "in place" (matches PyTorch buffers).
        input_output_aliases={1: 1, 2: 2},
        compiler_params=pltpu.CompilerParams(
            dimension_semantics=("parallel", "arbitrary"),
            vmem_limit_bytes=vmem_limit,
        ),
    )(x, m2, v2)

    return out, m_new.reshape(L), var_new.reshape(L)


def _reference(x, m, var, alpha_fwd, eps):
    """Pure-JAX reference (lax.scan over batch)."""
    def step(carry, xt):
        mu, v = carry
        diff = xt - mu
        out = diff / jnp.sqrt(v + eps)
        v_new = alpha_fwd * v + alpha_fwd * (1.0 - alpha_fwd) * diff * diff
        mu_new = alpha_fwd * mu + (1.0 - alpha_fwd) * xt
        return (mu_new, v_new), out

    (m_f, v_f), outs = lax.scan(step, (m, var), x)
    return outs, m_f, v_f


if __name__ == "__main__":
    # Module: Norm1d(num_features=L, alpha_fwd=0.999, alpha_bkw=0.99, eps=1e-5)
    N, L = 32, 256
    alpha_fwd, eps = 0.999, 1e-5

    key = jax.random.PRNGKey(0)
    x = jax.random.normal(key, (N, L), dtype=jnp.float32)

    # Deterministic buffer init (init_norm_params): m=0, var=1.
    m0 = jnp.zeros((L,), dtype=jnp.float32)
    var0 = jnp.ones((L,), dtype=jnp.float32)

    # Small tiles here so the test exercises both grid axes (2 feature tiles x
    # 4 batch chunks) and the scratch-carried running stats across chunks.
    out, m_new, var_new = online_norm1d_fwd(
        x, m0, var0, alpha_fwd=alpha_fwd, eps=eps,
        feat_tile=128, batch_block=8)
    jax.block_until_ready((out, m_new, var_new))

    out_ref, m_ref, var_ref = _reference(x, m0, var0, alpha_fwd, eps)
    assert jnp.allclose(out, out_ref, atol=1e-5, rtol=1e-5)
    assert jnp.allclose(m_new, m_ref, atol=1e-6, rtol=1e-6)
    assert jnp.allclose(var_new, var_ref, atol=1e-6, rtol=1e-6)

    # TODO(synk): backward control process (_C.norm_bwd with u/v buffers and
    # alpha_bkw) is not part of the forward pass and is not implemented here.

    print("KERNEL_OK")
</pallas_src>

<mosaic_0001>
module attributes {stable_mosaic.version = 11 : i64} {
  func.func @_online_norm1d_kernel(%arg0: i32, %arg1: i32, %arg2: memref<8x128xf32, #tpu.memory_space<vmem>>, %arg3: memref<1x128xf32, #tpu.memory_space<vmem>>, %arg4: memref<1x128xf32, #tpu.memory_space<vmem>>, %arg5: memref<8x128xf32, #tpu.memory_space<vmem>>, %arg6: memref<1x128xf32, #tpu.memory_space<vmem>>, %arg7: memref<1x128xf32, #tpu.memory_space<vmem>>, %arg8: memref<1x128xf32, #tpu.memory_space<vmem>>, %arg9: memref<1x128xf32, #tpu.memory_space<vmem>>) attributes {dimension_semantics = [#tpu.dimension_semantics<parallel>, #tpu.dimension_semantics<arbitrary>], iteration_bounds = array<i64: 2, 4>, scalar_prefetch = 0 : i64, scratch_operands = 2 : i64, tpu.core_type = #tpu.core_type<tc>, window_params = [{transform_indices = @transform_0, window_bounds = array<i64: 8, 128>}, {transform_indices = @transform_1, window_bounds = array<i64: 1, 128>}, {transform_indices = @transform_2, window_bounds = array<i64: 1, 128>}, {transform_indices = @transform_3, window_bounds = array<i64: 8, 128>}, {transform_indices = @transform_4, window_bounds = array<i64: 1, 128>}, {transform_indices = @transform_5, window_bounds = array<i64: 1, 128>}]} {
    %c0_i32 = arith.constant 0 : i32
    %0 = arith.cmpi eq, %arg1, %c0_i32 : i32
    %1 = arith.extui %0 : i1 to i32
    %c0_i32_0 = arith.constant 0 : i32
    %2 = arith.cmpi ne, %1, %c0_i32_0 : i32
    scf.if %2 {
      %c0_66 = arith.constant 0 : index
      %c0_67 = arith.constant 0 : index
      %170 = vector.load %arg3[%c0_66, %c0_67] : memref<1x128xf32, #tpu.memory_space<vmem>>, vector<1x128xf32>
      %c0_68 = arith.constant 0 : index
      %c0_69 = arith.constant 0 : index
      %171 = vector.load %arg8[%c0_68, %c0_69] : memref<1x128xf32, #tpu.memory_space<vmem>>, vector<1x128xf32>
      tpu.vector_store %arg8[%c0_68, %c0_69], %170 {strides = array<i32>} : memref<1x128xf32, #tpu.memory_space<vmem>>, vector<1x128xf32>,
      %c0_70 = arith.constant 0 : index
      %c0_71 = arith.constant 0 : index
      %172 = vector.load %arg4[%c0_70, %c0_71] : memref<1x128xf32, #tpu.memory_space<vmem>>, vector<1x128xf32>
      %c0_72 = arith.constant 0 : index
      %c0_73 = arith.constant 0 : index
      %173 = vector.load %arg9[%c0_72, %c0_73] : memref<1x128xf32, #tpu.memory_space<vmem>>, vector<1x128xf32>
      tpu.vector_store %arg9[%c0_72, %c0_73], %172 {strides = array<i32>} : memref<1x128xf32, #tpu.memory_space<vmem>>, vector<1x128xf32>,
    } else {
    }
    %c0 = arith.constant 0 : index
    %c0_1 = arith.constant 0 : index
    %3 = vector.load %arg8[%c0, %c0_1] : memref<1x128xf32, #tpu.memory_space<vmem>>, vector<1x128xf32>
    %c0_2 = arith.constant 0 : index
    %c0_3 = arith.constant 0 : index
    %4 = vector.load %arg9[%c0_2, %c0_3] : memref<1x128xf32, #tpu.memory_space<vmem>>, vector<1x128xf32>
    %c0_i32_4 = arith.constant 0 : i32
    %5 = arith.index_cast %c0_i32_4 : i32 to index
    %c0_5 = arith.constant 0 : index
    %6 = vector.load %arg2[%5, %c0_5] : memref<8x128xf32, #tpu.memory_space<vmem>>, vector<1x128xf32>
    %7 = arith.subf %6, %3 : vector<1x128xf32>
    %cst = arith.constant 9.99999974E-6 : f32
    %8 = vector.broadcast %cst : f32 to vector<1x128xf32>
    %9 = arith.addf %4, %8 : vector<1x128xf32>
    %10 = math.rsqrt %9 : vector<1x128xf32>
    %11 = arith.mulf %7, %10 : vector<1x128xf32>
    %12 = arith.index_cast %c0_i32_4 : i32 to index
    %c0_6 = arith.constant 0 : index
    %13 = vector.load %arg5[%12, %c0_6] : memref<8x128xf32, #tpu.memory_space<vmem>>, vector<1x128xf32>
    tpu.vector_store %arg5[%12, %c0_6], %11 {strides = array<i32>} : memref<8x128xf32, #tpu.memory_space<vmem>>, vector<1x128xf32>,
    %cst_7 = arith.constant 9.990000e-01 : f32
    %14 = vector.broadcast %cst_7 : f32 to vector<1x128xf32>
    %15 = arith.mulf %14, %4 : vector<1x128xf32>
    %16 = arith.mulf %7, %7 : vector<1x128xf32>
    %cst_8 = arith.constant 9.990000e-04 : f32
    %17 = vector.broadcast %cst_8 : f32 to vector<1x128xf32>
    %18 = arith.mulf %17, %16 : vector<1x128xf32>
    %19 = arith.addf %15, %18 : vector<1x128xf32>
    %cst_9 = arith.constant 9.990000e-01 : f32
    %20 = vector.broadcast %cst_9 : f32 to vector<1x128xf32>
    %21 = arith.mulf %20, %3 : vector<1x128xf32>
    %cst_10 = arith.constant 1.000000e-03 : f32
    %22 = vector.broadcast %cst_10 : f32 to vector<1x128xf32>
    %23 = arith.mulf %22, %6 : vector<1x128xf32>
    %24 = arith.addf %21, %23 : vector<1x128xf32>
    %c1_i32 = arith.constant 1 : i32
    %25 = arith.index_cast %c1_i32 : i32 to index
    %c0_11 = arith.constant 0 : index
    %26 = vector.load %arg2[%25, %c0_11] : memref<8x128xf32, #tpu.memory_space<vmem>>, vector<1x128xf32>
    %27 = arith.subf %26, %24 : vector<1x128xf32>
    %cst_12 = arith.constant 9.99999974E-6 : f32
    %28 = vector.broadcast %cst_12 : f32 to vector<1x128xf32>
    %29 = arith.addf %19, %28 : vector<1x128xf32>
    %30 = math.rsqrt %29 : vector<1x128xf32>
    %31 = arith.mulf %27, %30 : vector<1x128xf32>
    %32 = arith.index_cast %c1_i32 : i32 to index
    %c0_13 = arith.constant 0 : index
    %33 = vector.load %arg5[%32, %c0_13] : memref<8x128xf32, #tpu.memory_space<vmem>>, vector<1x128xf32>
    tpu.vector_store %arg5[%32, %c0_13], %31 {strides = array<i32>} : memref<8x128xf32, #tpu.memory_space<vmem>>, vector<1x128xf32>,
    %cst_14 = arith.constant 9.990000e-01 : f32
    %34 = vector.broadcast %cst_14 : f32 to vector<1x128xf32>
    %35 = arith.mulf %34, %19 : vector<1x128xf32>
    %36 = arith.mulf %27, %27 : vector<1x128xf32>
    %cst_15 = arith.constant 9.990000e-04 : f32
    %37 = vector.broadcast %cst_15 : f32 to vector<1x128xf32>
    %38 = arith.mulf %37, %36 : vector<1x128xf32>
    %39 = arith.addf %35, %38 : vector<1x128xf32>
    %cst_16 = arith.constant 9.990000e-01 : f32
    %40 = vector.broadcast %cst_16 : f32 to vector<1x128xf32>
    %41 = arith.mulf %40, %24 : vector<1x128xf32>
    %cst_17 = arith.constant 1.000000e-03 : f32
    %42 = vector.broadcast %cst_17 : f32 to vector<1x128xf32>
    %43 = arith.mulf %42, %26 : vector<1x128xf32>
    %44 = arith.addf %41, %43 : vector<1x128xf32>
    %c2_i32 = arith.constant 2 : i32
    %45 = arith.index_cast %c2_i32 : i32 to index
    %c0_18 = arith.constant 0 : index
    %46 = vector.load %arg2[%45, %c0_18] : memref<8x128xf32, #tpu.memory_space<vmem>>, vector<1x128xf32>
    %47 = arith.subf %46, %44 : vector<1x128xf32>
    %cst_19 = arith.constant 9.99999974E-6 : f32
    %48 = vector.broadcast %cst_19 : f32 to vector<1x128xf32>
    %49 = arith.addf %39, %48 : vector<1x128xf32>
    %50 = math.rsqrt %49 : vector<1x128xf32>
    %51 = arith.mulf %47, %50 : vector<1x128xf32>
    %52 = arith.index_cast %c2_i32 : i32 to index
    %c0_20 = arith.constant 0 : index
    %53 = vector.load %arg5[%52, %c0_20] : memref<8x128xf32, #tpu.memory_space<vmem>>, vector<1x128xf32>
    tpu.vector_store %arg5[%52, %c0_20], %51 {strides = array<i32>} : memref<8x128xf32, #tpu.memory_space<vmem>>, vector<1x128xf32>,
    %cst_21 = arith.constant 9.990000e-01 : f32
    %54 = vector.broadcast %cst_21 : f32 to vector<1x128xf32>
    %55 = arith.mulf %54, %39 : vector<1x128xf32>
    %56 = arith.mulf %47, %47 : vector<1x128xf32>
    %cst_22 = arith.constant 9.990000e-04 : f32
    %57 = vector.broadcast %cst_22 : f32 to vector<1x128xf32>
    %58 = arith.mulf %57, %56 : vector<1x128xf32>
    %59 = arith.addf %55, %58 : vector<1x128xf32>
    %cst_23 = arith.constant 9.990000e-01 : f32
    %60 = vector.broadcast %cst_23 : f32 to vector<1x128xf32>
    %61 = arith.mulf %60, %44 : vector<1x128xf32>
    %cst_24 = arith.constant 1.000000e-03 : f32
    %62 = vector.broadcast %cst_24 : f32 to vector<1x128xf32>
    %63 = arith.mulf %62, %46 : vector<1x128xf32>
    %64 = arith.addf %61, %63 : vector<1x128xf32>
    %c3_i32 = arith.constant 3 : i32
    %65 = arith.index_cast %c3_i32 : i32 to index
    %c0_25 = arith.constant 0 : index
    %66 = vector.load %arg2[%65, %c0_25] : memref<8x128xf32, #tpu.memory_space<vmem>>, vector<1x128xf32>
    %67 = arith.subf %66, %64 : vector<1x128xf32>
    %cst_26 = arith.constant 9.99999974E-6 : f32
    %68 = vector.broadcast %cst_26 : f32 to vector<1x128xf32>
    %69 = arith.addf %59, %68 : vector<1x128xf32>
    %70 = math.rsqrt %69 : vector<1x128xf32>
    %71 = arith.mulf %67, %70 : vector<1x128xf32>
    %72 = arith.index_cast %c3_i32 : i32 to index
    %c0_27 = arith.constant 0 : index
    %73 = vector.load %arg5[%72, %c0_27] : memref<8x128xf32, #tpu.memory_space<vmem>>, vector<1x128xf32>
    tpu.vector_store %arg5[%72, %c0_27], %71 {strides = array<i32>} : memref<8x128xf32, #tpu.memory_space<vmem>>, vector<1x128xf32>,
    %cst_28 = arith.constant 9.990000e-01 : f32
    %74 = vector.broadcast %cst_28 : f32 to vector<1x128xf32>
    %75 = arith.mulf %74, %59 : vector<1x128xf32>
    %76 = arith.mulf %67, %67 : vector<1x128xf32>
    %cst_29 = arith.constant 9.990000e-04 : f32
    %77 = vector.broadcast %cst_29 : f32 to vector<1x128xf32>
    %78 = arith.mulf %77, %76 : vector<1x128xf32>
    %79 = arith.addf %75, %78 : vector<1x128xf32>
    %cst_30 = arith.constant 9.990000e-01 : f32
    %80 = vector.broadcast %cst_30 : f32 to vector<1x128xf32>
    %81 = arith.mulf %80, %64 : vector<1x128xf32>
    %cst_31 = arith.constant 1.000000e-03 : f32
    %82 = vector.broadcast %cst_31 : f32 to vector<1x128xf32>
    %83 = arith.mulf %82, %66 : vector<1x128xf32>
    %84 = arith.addf %81, %83 : vector<1x128xf32>
    %c4_i32 = arith.constant 4 : i32
    %85 = arith.index_cast %c4_i32 : i32 to index
    %c0_32 = arith.constant 0 : index
    %86 = vector.load %arg2[%85, %c0_32] : memref<8x128xf32, #tpu.memory_space<vmem>>, vector<1x128xf32>
    %87 = arith.subf %86, %84 : vector<1x128xf32>
    %cst_33 = arith.constant 9.99999974E-6 : f32
    %88 = vector.broadcast %cst_33 : f32 to vector<1x128xf32>
    %89 = arith.addf %79, %88 : vector<1x128xf32>
    %90 = math.rsqrt %89 : vector<1x128xf32>
    %91 = arith.mulf %87, %90 : vector<1x128xf32>
    %92 = arith.index_cast %c4_i32 : i32 to index
    %c0_34 = arith.constant 0 : index
    %93 = vector.load %arg5[%92, %c0_34] : memref<8x128xf32, #tpu.memory_space<vmem>>, vector<1x128xf32>
    tpu.vector_store %arg5[%92, %c0_34], %91 {strides = array<i32>} : memref<8x128xf32, #tpu.memory_space<vmem>>, vector<1x128xf32>,
    %cst_35 = arith.constant 9.990000e-01 : f32
    %94 = vector.broadcast %cst_35 : f32 to vector<1x128xf32>
    %95 = arith.mulf %94, %79 : vector<1x128xf32>
    %96 = arith.mulf %87, %87 : vector<1x128xf32>
    %cst_36 = arith.constant 9.990000e-04 : f32
    %97 = vector.broadcast %cst_36 : f32 to vector<1x128xf32>
    %98 = arith.mulf %97, %96 : vector<1x128xf32>
    %99 = arith.addf %95, %98 : vector<1x128xf32>
    %cst_37 = arith.constant 9.990000e-01 : f32
    %100 = vector.broadcast %cst_37 : f32 to vector<1x128xf32>
    %101 = arith.mulf %100, %84 : vector<1x128xf32>
    %cst_38 = arith.constant 1.000000e-03 : f32
    %102 = vector.broadcast %cst_38 : f32 to vector<1x128xf32>
    %103 = arith.mulf %102, %86 : vector<1x128xf32>
    %104 = arith.addf %101, %103 : vector<1x128xf32>
    %c5_i32 = arith.constant 5 : i32
    %105 = arith.index_cast %c5_i32 : i32 to index
    %c0_39 = arith.constant 0 : index
    %106 = vector.load %arg2[%105, %c0_39] : memref<8x128xf32, #tpu.memory_space<vmem>>, vector<1x128xf32>
    %107 = arith.subf %106, %104 : vector<1x128xf32>
    %cst_40 = arith.constant 9.99999974E-6 : f32
    %108 = vector.broadcast %cst_40 : f32 to vector<1x128xf32>
    %109 = arith.addf %99, %108 : vector<1x128xf32>
    %110 = math.rsqrt %109 : vector<1x128xf32>
    %111 = arith.mulf %107, %110 : vector<1x128xf32>
    %112 = arith.index_cast %c5_i32 : i32 to index
    %c0_41 = arith.constant 0 : index
    %113 = vector.load %arg5[%112, %c0_41] : memref<8x128xf32, #tpu.memory_space<vmem>>, vector<1x128xf32>
    tpu.vector_store %arg5[%112, %c0_41], %111 {strides = array<i32>} : memref<8x128xf32, #tpu.memory_space<vmem>>, vector<1x128xf32>,
    %cst_42 = arith.constant 9.990000e-01 : f32
    %114 = vector.broadcast %cst_42 : f32 to vector<1x128xf32>
    %115 = arith.mulf %114, %99 : vector<1x128xf32>
    %116 = arith.mulf %107, %107 : vector<1x128xf32>
    %cst_43 = arith.constant 9.990000e-04 : f32
    %117 = vector.broadcast %cst_43 : f32 to vector<1x128xf32>
    %118 = arith.mulf %117, %116 : vector<1x128xf32>
    %119 = arith.addf %115, %118 : vector<1x128xf32>
    %cst_44 = arith.constant 9.990000e-01 : f32
    %120 = vector.broadcast %cst_44 : f32 to vector<1x128xf32>
    %121 = arith.mulf %120, %104 : vector<1x128xf32>
    %cst_45 = arith.constant 1.000000e-03 : f32
    %122 = vector.broadcast %cst_45 : f32 to vector<1x128xf32>
    %123 = arith.mulf %122, %106 : vector<1x128xf32>
    %124 = arith.addf %121, %123 : vector<1x128xf32>
    %c6_i32 = arith.constant 6 : i32
    %125 = arith.index_cast %c6_i32 : i32 to index
    %c0_46 = arith.constant 0 : index
    %126 = vector.load %arg2[%125, %c0_46] : memref<8x128xf32, #tpu.memory_space<vmem>>, vector<1x128xf32>
    %127 = arith.subf %126, %124 : vector<1x128xf32>
    %cst_47 = arith.constant 9.99999974E-6 : f32
    %128 = vector.broadcast %cst_47 : f32 to vector<1x128xf32>
    %129 = arith.addf %119, %128 : vector<1x128xf32>
    %130 = math.rsqrt %129 : vector<1x128xf32>
    %131 = arith.mulf %127, %130 : vector<1x128xf32>
    %132 = arith.index_cast %c6_i32 : i32 to index
    %c0_48 = arith.constant 0 : index
    %133 = vector.load %arg5[%132, %c0_48] : memref<8x128xf32, #tpu.memory_space<vmem>>, vector<1x128xf32>
    tpu.vector_store %arg5[%132, %c0_48], %131 {strides = array<i32>} : memref<8x128xf32, #tpu.memory_space<vmem>>, vector<1x128xf32>,
    %cst_49 = arith.constant 9.990000e-01 : f32
    %134 = vector.broadcast %cst_49 : f32 to vector<1x128xf32>
    %135 = arith.mulf %134, %119 : vector<1x128xf32>
    %136 = arith.mulf %127, %127 : vector<1x128xf32>
    %cst_50 = arith.constant 9.990000e-04 : f32
    %137 = vector.broadcast %cst_50 : f32 to vector<1x128xf32>
    %138 = arith.mulf %137, %136 : vector<1x128xf32>
    %139 = arith.addf %135, %138 : vector<1x128xf32>
    %cst_51 = arith.constant 9.990000e-01 : f32
    %140 = vector.broadcast %cst_51 : f32 to vector<1x128xf32>
    %141 = arith.mulf %140, %124 : vector<1x128xf32>
    %cst_52 = arith.constant 1.000000e-03 : f32
    %142 = vector.broadcast %cst_52 : f32 to vector<1x128xf32>
    %143 = arith.mulf %142, %126 : vector<1x128xf32>
    %144 = arith.addf %141, %143 : vector<1x128xf32>
    %c7_i32 = arith.constant 7 : i32
    %145 = arith.index_cast %c7_i32 : i32 to index
    %c0_53 = arith.constant 0 : index
    %146 = vector.load %arg2[%145, %c0_53] : memref<8x128xf32, #tpu.memory_space<vmem>>, vector<1x128xf32>
    %147 = arith.subf %146, %144 : vector<1x128xf32>
    %cst_54 = arith.constant 9.99999974E-6 : f32
    %148 = vector.broadcast %cst_54 : f32 to vector<1x128xf32>
    %149 = arith.addf %139, %148 : vector<1x128xf32>
    %150 = math.rsqrt %149 : vector<1x128xf32>
    %151 = arith.mulf %147, %150 : vector<1x128xf32>
    %152 = arith.index_cast %c7_i32 : i32 to index
    %c0_55 = arith.constant 0 : index
    %153 = vector.load %arg5[%152, %c0_55] : memref<8x128xf32, #tpu.memory_space<vmem>>, vector<1x128xf32>
    tpu.vector_store %arg5[%152, %c0_55], %151 {strides = array<i32>} : memref<8x128xf32, #tpu.memory_space<vmem>>, vector<1x128xf32>,
    %cst_56 = arith.constant 9.990000e-01 : f32
    %154 = vector.broadcast %cst_56 : f32 to vector<1x128xf32>
    %155 = arith.mulf %154, %139 : vector<1x128xf32>
    %156 = arith.mulf %147, %147 : vector<1x128xf32>
    %cst_57 = arith.constant 9.990000e-04 : f32
    %157 = vector.broadcast %cst_57 : f32 to vector<1x128xf32>
    %158 = arith.mulf %157, %156 : vector<1x128xf32>
    %159 = arith.addf %155, %158 : vector<1x128xf32>
    %cst_58 = arith.constant 9.990000e-01 : f32
    %160 = vector.broadcast %cst_58 : f32 to vector<1x128xf32>
    %161 = arith.mulf %160, %144 : vector<1x128xf32>
    %cst_59 = arith.constant 1.000000e-03 : f32
    %162 = vector.broadcast %cst_59 : f32 to vector<1x128xf32>
    %163 = arith.mulf %162, %146 : vector<1x128xf32>
    %164 = arith.addf %161, %163 : vector<1x128xf32>
    %c8_i32 = arith.constant 8 : i32
    %c0_60 = arith.constant 0 : index
    %c0_61 = arith.constant 0 : index
    %165 = vector.load %arg8[%c0_60, %c0_61] : memref<1x128xf32, #tpu.memory_space<vmem>>, vector<1x128xf32>
    tpu.vector_store %arg8[%c0_60, %c0_61], %164 {strides = array<i32>} : memref<1x128xf32, #tpu.memory_space<vmem>>, vector<1x128xf32>,
    %c0_62 = arith.constant 0 : index
    %c0_63 = arith.constant 0 : index
    %166 = vector.load %arg9[%c0_62, %c0_63] : memref<1x128xf32, #tpu.memory_space<vmem>>, vector<1x128xf32>
    tpu.vector_store %arg9[%c0_62, %c0_63], %159 {strides = array<i32>} : memref<1x128xf32, #tpu.memory_space<vmem>>, vector<1x128xf32>,
    %c3_i32_64 = arith.constant 3 : i32
    %167 = arith.cmpi eq, %arg1, %c3_i32_64 : i32
    %168 = arith.extui %167 : i1 to i32
    %c0_i32_65 = arith.constant 0 : i32
    %169 = arith.cmpi ne, %168, %c0_i32_65 : i32
    scf.if %169 {
      %c0_66 = arith.constant 0 : index
      %c0_67 = arith.constant 0 : index
      %170 = vector.load %arg8[%c0_66, %c0_67] : memref<1x128xf32, #tpu.memory_space<vmem>>, vector<1x128xf32>
      %c0_68 = arith.constant 0 : index
      %c0_69 = arith.constant 0 : index
      %171 = vector.load %arg6[%c0_68, %c0_69] : memref<1x128xf32, #tpu.memory_space<vmem>>, vector<1x128xf32>
      tpu.vector_store %arg6[%c0_68, %c0_69], %170 {strides = array<i32>} : memref<1x128xf32, #tpu.memory_space<vmem>>, vector<1x128xf32>,
      %c0_70 = arith.constant 0 : index
      %c0_71 = arith.constant 0 : index
      %172 = vector.load %arg9[%c0_70, %c0_71] : memref<1x128xf32, #tpu.memory_space<vmem>>, vector<1x128xf32>
      %c0_72 = arith.constant 0 : index
      %c0_73 = arith.constant 0 : index
      %173 = vector.load %arg7[%c0_72, %c0_73] : memref<1x128xf32, #tpu.memory_space<vmem>>, vector<1x128xf32>
      tpu.vector_store %arg7[%c0_72, %c0_73], %172 {strides = array<i32>} : memref<1x128xf32, #tpu.memory_space<vmem>>, vector<1x128xf32>,
    } else {
    }
    return
  }
  func.func @transform_0(%arg0: i32, %arg1: i32) -> (i32, i32) {
    %c0_i32 = arith.constant 0 : i32
    return %arg1, %arg0 : i32, i32
  }
  func.func @transform_1(%arg0: i32, %arg1: i32) -> (i32, i32) {
    %c0_i32 = arith.constant 0 : i32
    %c0_i32_0 = arith.constant 0 : i32
    return %c0_i32, %arg0 : i32, i32
  }
  func.func @transform_2(%arg0: i32, %arg1: i32) -> (i32, i32) {
    %c0_i32 = arith.constant 0 : i32
    %c0_i32_0 = arith.constant 0 : i32
    return %c0_i32, %arg0 : i32, i32
  }
  func.func @transform_3(%arg0: i32, %arg1: i32) -> (i32, i32) {
    %c0_i32 = arith.constant 0 : i32
    return %arg1, %arg0 : i32, i32
  }
  func.func @transform_4(%arg0: i32, %arg1: i32) -> (i32, i32) {
    %c0_i32 = arith.constant 0 : i32
    %c0_i32_0 = arith.constant 0 : i32
    return %c0_i32, %arg0 : i32, i32
  }
  func.func @transform_5(%arg0: i32, %arg1: i32) -> (i32, i32) {
    %c0_i32 = arith.constant 0 : i32
    %c0_i32_0 = arith.constant 0 : i32
    return %c0_i32, %arg0 : i32, i32
  }
}

</mosaic_0001>

<llo_original>
// kernel: tpu_custom_call.1
$region0: #{tpu_custom_call.1}
  #allocation0 [shape = 'u32[]', space=smem, size = 0x4, offset = 0x4, fixed_abs, tag = 'smem constant byte address 0x4 - core index']
  #allocation1 [shape = 'u32[72,128]{1,0:T(1,128)}', space=vmem, size = 0x9000, scoped, tag = 'internal scratch']
  #allocation2 [shape = 'f32[1,128]{1,0:T(1,128)}', space=vmem, size = 0x200, scoped, tag = 'scratch operand']
  #allocation3 [shape = 'f32[1,128]{1,0:T(1,128)}', space=vmem, size = 0x200, scoped, tag = 'scratch operand']
  %s0 = inlined_call_operand.hbm [shape: f32[32,256], index: 0, kind: input, shape index: {}]
  %s1 = inlined_call_operand.hbm [shape: f32[1,256], index: 1, kind: input, shape index: {}, may-alias: {1,4}]
  %s2 = inlined_call_operand.hbm [shape: f32[1,256], index: 2, kind: input, shape index: {}, may-alias: {2,5}]
  %s3 = inlined_call_operand.hbm [shape: f32[32,256], index: 3, kind: output, shape index: {0}]
  %s4 = inlined_call_operand.hbm [shape: f32[1,256], index: 4, kind: output, shape index: {1}, may-alias: {1,4}]
  %s5 = inlined_call_operand.hbm [shape: f32[1,256], index: 5, kind: output, shape index: {2}, may-alias: {2,5}]
  %6 = xla_tuple %s3, %s4, %s5
  %s7 = sld [smem:[#allocation0]]
  $region81: #{tpu_custom_call.1} parent=0
    _
  %s9 = ssub.s32 1, %s7
  %s10 = scalar_select 0, %s9, %s7
  $region1: #{tpu_custom_call.1} parent=0
    #allocation4 [shape = 'u8[8192]{0}', space=vmem, size = 0x2000, scoped, tag = 'input window, operand 0']
    #allocation5 [shape = 's32[2]{0}', space=sflag, size = 0x8, scoped, tag = 'scoped memory for tpu_custom_call.1']
    #allocation6 [shape = 's32[2]{0}', space=sflag, size = 0x8, scoped, tag = 'scoped memory for tpu_custom_call.1']
    #allocation7 [shape = 'u8[1024]{0}', space=vmem, size = 0x400, scoped, tag = 'input window, operand 1']
    #allocation8 [shape = 's32[2]{0}', space=sflag, size = 0x8, scoped, tag = 'scoped memory for tpu_custom_call.1']
    #allocation9 [shape = 'u8[1024]{0}', space=vmem, size = 0x400, scoped, tag = 'input window, operand 2']
    #allocation10 [shape = 'u8[8192]{0}', space=vmem, size = 0x2000, scoped, tag = 'output window, operand 0']
    #allocation11 [shape = 'u8[1024]{0}', space=vmem, size = 0x400, scoped, tag = 'output window, operand 1']
    #allocation12 [shape = 's32[2]{0}', space=sflag, size = 0x8, scoped, tag = 'scoped memory for tpu_custom_call.1']
    #allocation13 [shape = 'u8[1024]{0}', space=vmem, size = 0x400, scoped, tag = 'output window, operand 2']
    %11 = vsyncpa [#allocation5], 0
    %s12 = scalar_lea.sflag [#allocation5], 1
    %13 = vsyncpa %s12, 0
    %14 = vsyncpa [#allocation8], 0
    %s15 = scalar_lea.sflag [#allocation8], 1
    %16 = vsyncpa %s15, 0
    %17 = vsyncpa [#allocation6], 0
    %s18 = scalar_lea.sflag [#allocation6], 1
    %19 = vsyncpa %s18, 0
    %20 = vsyncpa [#allocation12], 0
    %s21 = scalar_lea.sflag [#allocation12], 1
    %22 = vsyncpa %s21, 0
    loop: start=0, step=1, limit=10
    $region2: #{tpu_custom_call.1} parent=1 // loop_pre_header
      _
    $region3: #{tpu_custom_call.1} parent=1 // loop_header
      %s24 = sphi 0, %s28
      %p25 = scmp.ge.s32.totalorder %s24, 10
      %s31 = sphi 0, %s43
      %s32 = sphi 0, %s39
      %s33 = sphi 0, %s31
      %s34 = sphi 0, %s32
      %s35 = sphi 0, %s33
      %s36 = sphi 0, %s34
      %s48 = sphi 0, %s50
      %s51 = sphi 0, %s48
      %s52 = sphi 0, %s51
      %s68 = sphi 0, %s52
      %s74 = sphi 0, %s76
      %s77 = sphi 0, %s74
      %s78 = sphi 0, %s77
      %s94 = sphi 0, %s78
      %s100 = sphi 0, %s102
      %s103 = sphi 0, %s100
      %s104 = sphi 0, %s103
      %s120 = sphi 0, %s104
      %s128 = sphi 0, %s130
      %s131 = sphi 0, %s128
      %s132 = sphi 0, %s131
      %s148 = sphi 0, %s132
      %s154 = sphi 0, %s156
      %s157 = sphi 0, %s154
      %s158 = sphi 0, %s157
      %s174 = sphi 0, %s158
      %s180 = sphi 0, %s182
      %s183 = sphi 0, %s180
      %s184 = sphi 0, %s183
      %s200 = sphi 0, %s184
    $region4: #{tpu_custom_call.1} parent=1 // loop_header_branch
      %27 = sbr.rel (%p25) target = $region8
    $region5: #{tpu_custom_call.1} parent=1 // loop_body
      %s29 = ssub.s32 %s24, 1
      %s30 = ssub.s32 %s24, 2
      %s37 = sadd.s32 1, %s32
      %p38 = scmp.ge.s32.totalorder %s37, 4
      %s39 = scalar_select %p38, 0, %s37
      %s40 = sadd.s32 1, %s31
      %s41 = scalar_select %p38, %s40, %s31
      %p42 = scmp.ge.s32.totalorder %s41, 2
      %s43 = scalar_select %p42, 0, %s41
      %s44 = ssub.s32 %s32, %s39
      %s45 = ssub.s32 %s31, %s43
      %s46 = sor.u32 %s44, %s45
      %p47 = scmp.eq.s32.totalorder %s46, 0
      %s49 = sadd.s32 %s48, 1
      %s50 = scalar_select %p47, %s48, %s49
      %p53 = pneg %p47
      %p54 = scmp.eq.s32.totalorder %s24, 7
      %p55 = por %p53, %p54
      %p56 = scmp.ne.s32.totalorder %s48, %s51
      %p57 = scmp.eq.s32.totalorder %s24, 0
      %p58 = por %p56, %p57
      %p59 = scmp.ne.s32.totalorder %s48, %s51
      %p60 = scmp.eq.s32.totalorder %s29, 7
      %p61 = por %p59, %p60
      %p62 = scmp.ne.s32.totalorder %s51, %s52
      %p63 = scmp.eq.s32.totalorder %s29, 0
      %p64 = por %p62, %p63
      %p65 = scmp.ne.s32.totalorder %s51, %s52
      %p66 = scmp.eq.s32.totalorder %s30, 7
      %p67 = por %p65, %p66
      %p69 = scmp.ne.s32.totalorder %s52, %s68
      %p70 = scmp.eq.s32.totalorder %s30, 0
      %p71 = por %p69, %p70
      %s72 = ssub.s32 %s31, %s43
      %p73 = scmp.eq.s32.totalorder %s72, 0
      %s75 = sadd.s32 %s74, 1
      %s76 = scalar_select %p73, %s74, %s75
      %p79 = pneg %p73
      %p80 = scmp.eq.s32.totalorder %s24, 7
      %p81 = por %p79, %p80
      %p82 = scmp.ne.s32.totalorder %s74, %s77
      %p83 = scmp.eq.s32.totalorder %s24, 0
      %p84 = por %p82, %p83
      %p85 = scmp.ne.s32.totalorder %s74, %s77
      %p86 = scmp.eq.s32.totalorder %s29, 7
      %p87 = por %p85, %p86
      %p88 = scmp.ne.s32.totalorder %s77, %s78
      %p89 = scmp.eq.s32.totalorder %s29, 0
      %p90 = por %p88, %p89
      %p91 = scmp.ne.s32.totalorder %s77, %s78
      %p92 = scmp.eq.s32.totalorder %s30, 7
      %p93 = por %p91, %p92
      %p95 = scmp.ne.s32.totalorder %s78, %s94
      %p96 = scmp.eq.s32.totalorder %s30, 0
      %p97 = por %p95, %p96
      %s98 = ssub.s32 %s31, %s43
      %p99 = scmp.eq.s32.totalorder %s98, 0
      %s101 = sadd.s32 %s100, 1
      %s102 = scalar_select %p99, %s100, %s101
      %p105 = pneg %p99
      %p106 = scmp.eq.s32.totalorder %s24, 7
      %p107 = por %p105, %p106
      %p108 = scmp.ne.s32.totalorder %s100, %s103
      %p109 = scmp.eq.s32.totalorder %s24, 0
      %p110 = por %p108, %p109
      %p111 = scmp.ne.s32.totalorder %s100, %s103
      %p112 = scmp.eq.s32.totalorder %s29, 7
      %p113 = por %p111, %p112
      %p114 = scmp.ne.s32.totalorder %s103, %s104
      %p115 = scmp.eq.s32.totalorder %s29, 0
      %p116 = por %p114, %p115
      %p117 = scmp.ne.s32.totalorder %s103, %s104
      %p118 = scmp.eq.s32.totalorder %s30, 7
      %p119 = por %p117, %p118
      %p121 = scmp.ne.s32.totalorder %s104, %s120
      %p122 = scmp.eq.s32.totalorder %s30, 0
      %p123 = por %p121, %p122
      %s124 = ssub.s32 %s32, %s39
      %s125 = ssub.s32 %s31, %s43
      %s126 = sor.u32 %s124, %s125
      %p127 = scmp.eq.s32.totalorder %s126, 0
      %s129 = sadd.s32 %s128, 1
      %s130 = scalar_select %p127, %s128, %s129
      %p133 = pneg %p127
      %p134 = scmp.eq.s32.totalorder %s24, 7
      %p135 = por %p133, %p134
      %p136 = scmp.ne.s32.totalorder %s128, %s131
      %p137 = scmp.eq.s32.totalorder %s24, 0
      %p138 = por %p136, %p137
      %p139 = scmp.ne.s32.totalorder %s128, %s131
      %p140 = scmp.eq.s32.totalorder %s29, 7
      %p141 = por %p139, %p140
      %p142 = scmp.ne.s32.totalorder %s131, %s132
      %p143 = scmp.eq.s32.totalorder %s29, 0
      %p144 = por %p142, %p143
      %p145 = scmp.ne.s32.totalorder %s131, %s132
      %p146 = scmp.eq.s32.totalorder %s30, 7
      %p147 = por %p145, %p146
      %p149 = scmp.ne.s32.totalorder %s132, %s148
      %p150 = scmp.eq.s32.totalorder %s30, 0
      %p151 = por %p149, %p150
      %s152 = ssub.s32 %s31, %s43
      %p153 = scmp.eq.s32.totalorder %s152, 0
      %s155 = sadd.s32 %s154, 1
      %s156 = scalar_select %p153, %s154, %s155
      %p159 = pneg %p153
      %p160 = scmp.eq.s32.totalorder %s24, 7
      %p161 = por %p159, %p160
      %p162 = scmp.ne.s32.totalorder %s154, %s157
      %p163 = scmp.eq.s32.totalorder %s24, 0
      %p164 = por %p162, %p163
      %p165 = scmp.ne.s32.totalorder %s154, %s157
      %p166 = scmp.eq.s32.totalorder %s29, 7
      %p167 = por %p165, %p166
      %p168 = scmp.ne.s32.totalorder %s157, %s158
      %p169 = scmp.eq.s32.totalorder %s29, 0
      %p170 = por %p168, %p169
      %p171 = scmp.ne.s32.totalorder %s157, %s158
      %p172 = scmp.eq.s32.totalorder %s30, 7
      %p173 = por %p171, %p172
      %p175 = scmp.ne.s32.totalorder %s158, %s174
      %p176 = scmp.eq.s32.totalorder %s30, 0
      %p177 = por %p175, %p176
      %s178 = ssub.s32 %s31, %s43
      %p179 = scmp.eq.s32.totalorder %s178, 0
      %s181 = sadd.s32 %s180, 1
      %s182 = scalar_select %p179, %s180, %s181
      %p185 = pneg %p179
      %p186 = scmp.eq.s32.totalorder %s24, 7
      %p187 = por %p185, %p186
      %p188 = scmp.ne.s32.totalorder %s180, %s183
      %p189 = scmp.eq.s32.totalorder %s24, 0
      %p190 = por %p188, %p189
      %p191 = scmp.ne.s32.totalorder %s180, %s183
      %p192 = scmp.eq.s32.totalorder %s29, 7
      %p193 = por %p191, %p192
      %p194 = scmp.ne.s32.totalorder %s183, %s184
      %p195 = scmp.eq.s32.totalorder %s29, 0
      %p196 = por %p194, %p195
      %p197 = scmp.ne.s32.totalorder %s183, %s184
      %p198 = scmp.eq.s32.totalorder %s30, 7
      %p199 = por %p197, %p198
      %p201 = scmp.ne.s32.totalorder %s184, %s200
      %p202 = scmp.eq.s32.totalorder %s30, 0
      %p203 = por %p201, %p202
      %p204 = scmp.le.s32.totalorder 1, %s24
      %p205 = scmp.lt.s32.totalorder %s24, 9
      %p206 = pnand %p204, %p205
      %p207 = pneg %p206
      // Predicated region
      $region9: #{tpu_custom_call.1} parent=5 // pred_check
        _
      $region10: #{tpu_custom_call.1} parent=5 // pred_check_branch
        %209 = sbr.rel (%p206) target = $region12
      $region11: #{tpu_custom_call.1} parent=5 // pred_region
        %s210 = ssub.s32 %s24, 1
      $region12: #{tpu_custom_call.1} parent=5 // pred_fallthru
        _
      %p211 = scmp.lt.s32.totalorder %s24, 8
      // Predicated region
      $region13: #{tpu_custom_call.1} parent=5 // pred_check
        %p212 = pneg %p211
      $region14: #{tpu_custom_call.1} parent=5 // pred_check_branch
        %214 = sbr.rel (%p212) target = $region16
      $region15: #{tpu_custom_call.1} parent=5 // pred_region
        // Predicated region
        $region17: #{tpu_custom_call.1} parent=15 // pred_check
          %p215 = pneg %p58
        $region18: #{tpu_custom_call.1} parent=15 // pred_check_branch
          %217 = sbr.rel (%p215) target = $region20
        $region19: #{tpu_custom_call.1} parent=15 // pred_region
          %s218 = sand.u32 %s48, 1
          %s219 = scalar_lea.sflag [#allocation5], %s218
          %s220 = sand.u32 %s48, 1
          %s221 = smul.addr %s220, 8
          %s222 = scalar_lea.vmem [#allocation4], %s221
          %224 = vsyncadd %s219, 0
          %s225 = smul.addr %s32, 2
          %s226 = sadd.s32 %s31, %s225
          %s227 = smul.addr %s226, 8
          %s228 = scalar_lea.hbm %s0, %s227
          %s230 = sshll.u32 %s228, 4
          %s231 = int_to_ptr.hbm [resolvable:$true] %s230
          %s232 = sshll.u32 %s222, 4
          %s233 = int_to_ptr.vmem [resolvable:$true] %s232
          %235 = dma.hbm_to_vmem [thread:$0]  %s231, 128, %s233, %s219
        $region20: #{tpu_custom_call.1} parent=15 // pred_fallthru
          _
        // Predicated region
        $region21: #{tpu_custom_call.1} parent=15 // pred_check
          %p236 = pneg %p84
        $region22: #{tpu_custom_call.1} parent=15 // pred_check_branch
          %238 = sbr.rel (%p236) target = $region24
        $region23: #{tpu_custom_call.1} parent=15 // pred_region
          %s239 = sand.u32 %s24, 1
          %s240 = scalar_lea.sflag [#allocation8], %s239
          %s241 = sand.u32 %s74, 1
          %s242 = scalar_lea.vmem [#allocation7], %s241
          %244 = vsyncadd %s240, 0
          %s245 = scalar_lea.hbm %s1, %s31
          %s247 = sshll.u32 %s245, 4
          %s248 = int_to_ptr.hbm [resolvable:$true] %s247
          %s249 = sshll.u32 %s242, 4
          %s250 = int_to_ptr.vmem [resolvable:$true] %s249
          %252 = dma.hbm_to_vmem [thread:$0]  %s248, 16, %s250, %s240
        $region24: #{tpu_custom_call.1} parent=15 // pred_fallthru
          _
        // Predicated region
        $region25: #{tpu_custom_call.1} parent=15 // pred_check
          %p253 = pneg %p110
        $region26: #{tpu_custom_call.1} parent=15 // pred_check_branch
          %255 = sbr.rel (%p253) target = $region28
        $region27: #{tpu_custom_call.1} parent=15 // pred_region
          %s256 = sand.u32 %s24, 1
          %s257 = scalar_lea.sflag [#allocation8], %s256
          %s258 = sand.u32 %s100, 1
          %s259 = scalar_lea.vmem [#allocation9], %s258
          %261 = vsyncadd %s257, 0
          %s262 = scalar_lea.hbm %s2, %s31
          %s264 = sshll.u32 %s262, 4
          %s265 = int_to_ptr.hbm [resolvable:$true] %s264
          %s266 = sshll.u32 %s259, 4
          %s267 = int_to_ptr.vmem [resolvable:$true] %s266
          %269 = dma.hbm_to_vmem [thread:$0]  %s265, 16, %s267, %s257
        $region28: #{tpu_custom_call.1} parent=15 // pred_fallthru
          _
      $region16: #{tpu_custom_call.1} parent=5 // pred_fallthru
        _
      %p270 = scmp.le.s32.totalorder 1, %s24
      %p271 = scmp.lt.s32.totalorder %s24, 9
      %p272 = pnand %p270, %p271
      %p273 = pneg %p272
      // Predicated region
      $region29: #{tpu_custom_call.1} parent=5 // pred_check
        _
      $region30: #{tpu_custom_call.1} parent=5 // pred_check_branch
        %275 = sbr.rel (%p272) target = $region32
      $region31: #{tpu_custom_call.1} parent=5 // pred_region
        %s276 = ssub.s32 %s24, 1
        %s277 = sand.u32 %s51, 1
        %s278 = scalar_lea.sflag [#allocation5], %s277
        %s279 = sand.u32 %s51, 1
        %s280 = smul.addr %s279, 8
        %s281 = scalar_lea.vmem [#allocation4], %s280
        // Predicated region
        $region33: #{tpu_custom_call.1} parent=31 // pred_check
          %p282 = pneg %p64
        $region34: #{tpu_custom_call.1} parent=31 // pred_check_branch
          %284 = sbr.rel (%p282) target = $region36
        $region35: #{tpu_custom_call.1} parent=31 // pred_region
          %286 = dma.done %s278, 128
        $region36: #{tpu_custom_call.1} parent=31 // pred_fallthru
          _
        %s287 = sand.u32 %s29, 1
        %s288 = scalar_lea.sflag [#allocation8], %s287
        %s289 = sand.u32 %s77, 1
        %s290 = scalar_lea.vmem [#allocation7], %s289
        // Predicated region
        $region37: #{tpu_custom_call.1} parent=31 // pred_check
          %p291 = pneg %p90
        $region38: #{tpu_custom_call.1} parent=31 // pred_check_branch
          %293 = sbr.rel (%p291) target = $region40
        $region39: #{tpu_custom_call.1} parent=31 // pred_region
          %295 = dma.done %s288, 16
        $region40: #{tpu_custom_call.1} parent=31 // pred_fallthru
          _
        %s296 = sand.u32 %s29, 1
        %s297 = scalar_lea.sflag [#allocation8], %s296
        %s298 = sand.u32 %s103, 1
        %s299 = scalar_lea.vmem [#allocation9], %s298
        // Predicated region
        $region41: #{tpu_custom_call.1} parent=31 // pred_check
          %p300 = pneg %p116
        $region42: #{tpu_custom_call.1} parent=31 // pred_check_branch
          %302 = sbr.rel (%p300) target = $region44
        $region43: #{tpu_custom_call.1} parent=31 // pred_region
          %304 = dma.done %s297, 16
        $region44: #{tpu_custom_call.1} parent=31 // pred_fallthru
          _
        %s305 = sand.u32 %s51, 1
        %s306 = scalar_lea.sflag [#allocation5], %s305
        %s307 = sand.u32 %s51, 1
        %s308 = smul.addr %s307, 8
        %s309 = scalar_lea.vmem [#allocation4], %s308
        %p310 = pneg %p64
        %p311 = pneg %p61
        %s312 = sand.u32 %s29, 1
        %s313 = scalar_lea.sflag [#allocation8], %s312
        %s314 = sand.u32 %s77, 1
        %s315 = scalar_lea.vmem [#allocation7], %s314
        %p316 = pneg %p90
        %p317 = pneg %p87
        %s318 = sand.u32 %s29, 1
        %s319 = scalar_lea.sflag [#allocation8], %s318
        %s320 = sand.u32 %s103, 1
        %s321 = scalar_lea.vmem [#allocation9], %s320
        %p322 = pneg %p116
        %p323 = pneg %p113
        %p324 = pneg %p144
        %p325 = pneg %p141
        %s326 = sand.u32 %s131, 1
        %s327 = scalar_lea.sflag [#allocation6], %s326
        %s328 = sand.u32 %s131, 1
        %s329 = smul.addr %s328, 8
        %s330 = scalar_lea.vmem [#allocation10], %s329
        %p331 = pneg %p170
        %p332 = pneg %p167
        %s333 = sand.u32 %s29, 1
        %s334 = scalar_lea.sflag [#allocation12], %s333
        %s335 = sand.u32 %s157, 1
        %s336 = scalar_lea.vmem [#allocation11], %s335
        %p337 = pneg %p196
        %p338 = pneg %p193
        %s339 = sand.u32 %s29, 1
        %s340 = scalar_lea.sflag [#allocation12], %s339
        %s341 = sand.u32 %s183, 1
        %s342 = scalar_lea.vmem [#allocation13], %s341
        %p343 = scmp.eq.s32.totalorder %s34, 0
        // Predicated region
        $region45: #{tpu_custom_call.1} parent=31 // pred_check
          %p344 = pneg %p343
        $region46: #{tpu_custom_call.1} parent=31 // pred_check_branch
          %346 = sbr.rel (%p344) target = $region48
        $region47: #{tpu_custom_call.1} parent=31 // pred_region
          %v347 = vld [vmem:[%s290] sm:$0x1]
          %348 = vst [vmem:[#allocation2] sm:$0x1] %v347
          %v349 = vld [vmem:[%s299] sm:$0x1]
          %350 = vst [vmem:[#allocation3] sm:$0x1] %v349
        $region48: #{tpu_custom_call.1} parent=31 // pred_fallthru
          _
        %v351 = vld [vmem:[#allocation2] sm:$0x1]
        %v352 = vld [vmem:[#allocation3] sm:$0x1]
        %v353 = vld [vmem:[%s281] sm:$0x1]
        %v354 = vsub.f32 %v353, %v351
        %v355 = vadd.f32 %v352, 1e-05
        %v356 = vrsqrt.pop %v355
        %v357 = vmul.f32 %v356, %v355
        %v358 = vmul.f32 %v357, %v356
        %v359 = vmul.f32 0.5, %v358
        %v360 = vsub.f32 1.5, %v359
        %v361 = vmul.f32 %v356, %v360
        %vm362 = vweird.f32 %v355
        %vm363 = vweird.f32 %v356
        %vm364 = vmor %vm362, %vm363
        %v365 = vsel %vm364, %v356, %v361
        %v366 = vmul.f32 %v354, %v365
        %367 = vst [vmem:[%s330] sm:$0x1] %v366
        %v368 = vmul.f32 %v352, 0.999
        %v369 = vmul.f32 %v354, %v354
        %v370 = vmul.f32 %v369, 0.000999
        %v371 = vadd.f32 %v368, %v370
        %v372 = vmul.f32 %v351, 0.999
        %v373 = vmul.f32 %v353, 0.001
        %v374 = vadd.f32 %v372, %v373
        %v375 = vld [vmem:[%s281 + $0x1] sm:$0x1]
        %v376 = vsub.f32 %v375, %v374
        %v377 = vadd.f32 %v371, 1e-05
        %v378 = vrsqrt.pop %v377
        %v379 = vmul.f32 %v378, %v377
        %v380 = vmul.f32 %v379, %v378
        %v381 = vmul.f32 0.5, %v380
        %v382 = vsub.f32 1.5, %v381
        %v383 = vmul.f32 %v378, %v382
        %vm384 = vweird.f32 %v377
        %vm385 = vweird.f32 %v378
        %vm386 = vmor %vm384, %vm385
        %v387 = vsel %vm386, %v378, %v383
        %v388 = vmul.f32 %v376, %v387
        %389 = vst [vmem:[%s330 + $0x1] sm:$0x1] %v388
        %v390 = vmul.f32 %v371, 0.999
        %v391 = vmul.f32 %v376, %v376
        %v392 = vmul.f32 %v391, 0.000999
        %v393 = vadd.f32 %v390, %v392
        %v394 = vmul.f32 %v374, 0.999
        %v395 = vmul.f32 %v375, 0.001
        %v396 = vadd.f32 %v394, %v395
        %v397 = vld [vmem:[%s281 + $0x2] sm:$0x1]
        %v398 = vsub.f32 %v397, %v396
        %v399 = vadd.f32 %v393, 1e-05
        %v400 = vrsqrt.pop %v399
        %v401 = vmul.f32 %v400, %v399
        %v402 = vmul.f32 %v401, %v400
        %v403 = vmul.f32 0.5, %v402
        %v404 = vsub.f32 1.5, %v403
        %v405 = vmul.f32 %v400, %v404
        %vm406 = vweird.f32 %v399
        %vm407 = vweird.f32 %v400
        %vm408 = vmor %vm406, %vm407
        %v409 = vsel %vm408, %v400, %v405
        %v410 = vmul.f32 %v398, %v409
        %411 = vst [vmem:[%s330 + $0x2] sm:$0x1] %v410
        %v412 = vmul.f32 %v393, 0.999
        %v413 = vmul.f32 %v398, %v398
        %v414 = vmul.f32 %v413, 0.000999
        %v415 = vadd.f32 %v412, %v414
        %v416 = vmul.f32 %v396, 0.999
        %v417 = vmul.f32 %v397, 0.001
        %v418 = vadd.f32 %v416, %v417
        %v419 = vld [vmem:[%s281 + $0x3] sm:$0x1]
        %v420 = vsub.f32 %v419, %v418
        %v421 = vadd.f32 %v415, 1e-05
        %v422 = vrsqrt.pop %v421
        %v423 = vmul.f32 %v422, %v421
        %v424 = vmul.f32 %v423, %v422
        %v425 = vmul.f32 0.5, %v424
        %v426 = vsub.f32 1.5, %v425
        %v427 = vmul.f32 %v422, %v426
        %vm428 = vweird.f32 %v421
        %vm429 = vweird.f32 %v422
        %vm430 = vmor %vm428, %vm429
        %v431 = vsel %vm430, %v422, %v427
        %v432 = vmul.f32 %v420, %v431
        %433 = vst [vmem:[%s330 + $0x3] sm:$0x1] %v432
        %v434 = vmul.f32 %v415, 0.999
        %v435 = vmul.f32 %v420, %v420
        %v436 = vmul.f32 %v435, 0.000999
        %v437 = vadd.f32 %v434, %v436
        %v438 = vmul.f32 %v418, 0.999
        %v439 = vmul.f32 %v419, 0.001
        %v440 = vadd.f32 %v438, %v439
        %v441 = vld [vmem:[%s281 + $0x4] sm:$0x1]
        %v442 = vsub.f32 %v441, %v440
        %v443 = vadd.f32 %v437, 1e-05
        %v444 = vrsqrt.pop %v443
        %v445 = vmul.f32 %v444, %v443
        %v446 = vmul.f32 %v445, %v444
        %v447 = vmul.f32 0.5, %v446
        %v448 = vsub.f32 1.5, %v447
        %v449 = vmul.f32 %v444, %v448
        %vm450 = vweird.f32 %v443
        %vm451 = vweird.f32 %v444
        %vm452 = vmor %vm450, %vm451
        %v453 = vsel %vm452, %v444, %v449
        %v454 = vmul.f32 %v442, %v453
        %455 = vst [vmem:[%s330 + $0x4] sm:$0x1] %v454
        %v456 = vmul.f32 %v437, 0.999
        %v457 = vmul.f32 %v442, %v442
        %v458 = vmul.f32 %v457, 0.000999
        %v459 = vadd.f32 %v456, %v458
        %v460 = vmul.f32 %v440, 0.999
        %v461 = vmul.f32 %v441, 0.001
        %v462 = vadd.f32 %v460, %v461
        %v463 = vld [vmem:[%s281 + $0x5] sm:$0x1]
        %v464 = vsub.f32 %v463, %v462
        %v465 = vadd.f32 %v459, 1e-05
        %v466 = vrsqrt.pop %v465
        %v467 = vmul.f32 %v466, %v465
        %v468 = vmul.f32 %v467, %v466
        %v469 = vmul.f32 0.5, %v468
        %v470 = vsub.f32 1.5, %v469
        %v471 = vmul.f32 %v466, %v470
        %vm472 = vweird.f32 %v465
        %vm473 = vweird.f32 %v466
        %vm474 = vmor %vm472, %vm473
        %v475 = vsel %vm474, %v466, %v471
        %v476 = vmul.f32 %v464, %v475
        %477 = vst [vmem:[%s330 + $0x5] sm:$0x1] %v476
        %v478 = vmul.f32 %v459, 0.999
        %v479 = vmul.f32 %v464, %v464
        %v480 = vmul.f32 %v479, 0.000999
        %v481 = vadd.f32 %v478, %v480
        %v482 = vmul.f32 %v462, 0.999
        %v483 = vmul.f32 %v463, 0.001
        %v484 = vadd.f32 %v482, %v483
        %v485 = vld [vmem:[%s281 + $0x6] sm:$0x1]
        %v486 = vsub.f32 %v485, %v484
        %v487 = vadd.f32 %v481, 1e-05
        %v488 = vrsqrt.pop %v487
        %v489 = vmul.f32 %v488, %v487
        %v490 = vmul.f32 %v489, %v488
        %v491 = vmul.f32 0.5, %v490
        %v492 = vsub.f32 1.5, %v491
        %v493 = vmul.f32 %v488, %v492
        %vm494 = vweird.f32 %v487
        %vm495 = vweird.f32 %v488
        %vm496 = vmor %vm494, %vm495
        %v497 = vsel %vm496, %v488, %v493
        %v498 = vmul.f32 %v486, %v497
        %499 = vst [vmem:[%s330 + $0x6] sm:$0x1] %v498
        %v500 = vmul.f32 %v481, 0.999
        %v501 = vmul.f32 %v486, %v486
        %v502 = vmul.f32 %v501, 0.000999
        %v503 = vadd.f32 %v500, %v502
        %v504 = vmul.f32 %v484, 0.999
        %v505 = vmul.f32 %v485, 0.001
        %v506 = vadd.f32 %v504, %v505
        %v507 = vld [vmem:[%s281 + $0x7] sm:$0x1]
        %v508 = vsub.f32 %v507, %v506
        %v509 = vadd.f32 %v503, 1e-05
        %v510 = vrsqrt.pop %v509
        %v511 = vmul.f32 %v510, %v509
        %v512 = vmul.f32 %v511, %v510
        %v513 = vmul.f32 0.5, %v512
        %v514 = vsub.f32 1.5, %v513
        %v515 = vmul.f32 %v510, %v514
        %vm516 = vweird.f32 %v509
        %vm517 = vweird.f32 %v510
        %vm518 = vmor %vm516, %vm517
        %v519 = vsel %vm518, %v510, %v515
        %v520 = vmul.f32 %v508, %v519
        %521 = vst [vmem:[%s330 + $0x7] sm:$0x1] %v520
        %v522 = vmul.f32 %v503, 0.999
        %v523 = vmul.f32 %v508, %v508
        %v524 = vmul.f32 %v523, 0.000999
        %v525 = vadd.f32 %v522, %v524
        %v526 = vmul.f32 %v506, 0.999
        %v527 = vmul.f32 %v507, 0.001
        %v528 = vadd.f32 %v526, %v527
        %529 = vst [vmem:[#allocation2] sm:$0x1] %v528
        %530 = vst [vmem:[#allocation3] sm:$0x1] %v525
        %p531 = scmp.eq.s32.totalorder %s34, 3
        // Predicated region
        $region49: #{tpu_custom_call.1} parent=31 // pred_check
          %p532 = pneg %p531
        $region50: #{tpu_custom_call.1} parent=31 // pred_check_branch
          %534 = sbr.rel (%p532) target = $region52
        $region51: #{tpu_custom_call.1} parent=31 // pred_region
          %v535 = vld [vmem:[#allocation2] sm:$0x1]
          %536 = vst [vmem:[%s336] sm:$0x1] %v535
          %v537 = vld [vmem:[#allocation3] sm:$0x1]
          %538 = vst [vmem:[%s342] sm:$0x1] %v537
        $region52: #{tpu_custom_call.1} parent=31 // pred_fallthru
          _
        %s539 = sand.u32 %s131, 1
        %s540 = scalar_lea.sflag [#allocation6], %s539
        %s541 = sand.u32 %s131, 1
        %s542 = smul.addr %s541, 8
        %s543 = scalar_lea.vmem [#allocation10], %s542
        %s544 = sand.u32 %s29, 1
        %s545 = scalar_lea.sflag [#allocation12], %s544
        %s546 = sand.u32 %s157, 1
        %s547 = scalar_lea.vmem [#allocation11], %s546
        %s548 = sand.u32 %s29, 1
        %s549 = scalar_lea.sflag [#allocation12], %s548
        %s550 = sand.u32 %s183, 1
        %s551 = scalar_lea.vmem [#allocation13], %s550
        // Predicated region
        $region53: #{tpu_custom_call.1} parent=31 // pred_check
          %p552 = pneg %p141
        $region54: #{tpu_custom_call.1} parent=31 // pred_check_branch
          %554 = sbr.rel (%p552) target = $region56
        $region55: #{tpu_custom_call.1} parent=31 // pred_region
          %556 = vsyncadd %s540, 0
          %s557 = smul.addr %s34, 2
          %s558 = sadd.s32 %s33, %s557
          %s559 = smul.addr %s558, 8
          %s560 = scalar_lea.hbm %s3, %s559
          %s562 = sshll.u32 %s543, 4
          %s563 = int_to_ptr.vmem [resolvable:$true] %s562
          %s564 = sshll.u32 %s560, 4
          %s565 = int_to_ptr.hbm [resolvable:$true] %s564
          %567 = dma.vmem_to_hbm [thread:$0]  %s563, 128, %s565, %s540
        $region56: #{tpu_custom_call.1} parent=31 // pred_fallthru
          _
        // Predicated region
        $region57: #{tpu_custom_call.1} parent=31 // pred_check
          %p568 = pneg %p167
        $region58: #{tpu_custom_call.1} parent=31 // pred_check_branch
          %570 = sbr.rel (%p568) target = $region60
        $region59: #{tpu_custom_call.1} parent=31 // pred_region
          %572 = vsyncadd %s545, 0
          %s573 = scalar_lea.hbm %s4, %s33
          %s575 = sshll.u32 %s547, 4
          %s576 = int_to_ptr.vmem [resolvable:$true] %s575
          %s577 = sshll.u32 %s573, 4
          %s578 = int_to_ptr.hbm [resolvable:$true] %s577
          %580 = dma.vmem_to_hbm [thread:$0]  %s576, 16, %s578, %s545
        $region60: #{tpu_custom_call.1} parent=31 // pred_fallthru
          _
        // Predicated region
        $region61: #{tpu_custom_call.1} parent=31 // pred_check
          %p581 = pneg %p193
        $region62: #{tpu_custom_call.1} parent=31 // pred_check_branch
          %583 = sbr.rel (%p581) target = $region64
        $region63: #{tpu_custom_call.1} parent=31 // pred_region
          %585 = vsyncadd %s549, 0
          %s586 = scalar_lea.hbm %s5, %s33
          %s588 = sshll.u32 %s551, 4
          %s589 = int_to_ptr.vmem [resolvable:$true] %s588
          %s590 = sshll.u32 %s586, 4
          %s591 = int_to_ptr.hbm [resolvable:$true] %s590
          %593 = dma.vmem_to_hbm [thread:$0]  %s589, 16, %s591, %s549
        $region64: #{tpu_custom_call.1} parent=31 // pred_fallthru
          _
      $region32: #{tpu_custom_call.1} parent=5 // pred_fallthru
        _
      %p594 = scmp.le.s32.totalorder 2, %s24
      // Predicated region
      $region65: #{tpu_custom_call.1} parent=5 // pred_check
        %p595 = pneg %p594
      $region66: #{tpu_custom_call.1} parent=5 // pred_check_branch
        %597 = sbr.rel (%p595) target = $region68
      $region67: #{tpu_custom_call.1} parent=5 // pred_region
        %s598 = ssub.s32 %s24, 2
        // Predicated region
        $region69: #{tpu_custom_call.1} parent=67 // pred_check
          %p599 = pneg %p147
        $region70: #{tpu_custom_call.1} parent=67 // pred_check_branch
          %601 = sbr.rel (%p599) target = $region72
        $region71: #{tpu_custom_call.1} parent=67 // pred_region
          %s602 = sand.u32 %s132, 1
          %s603 = scalar_lea.sflag [#allocation6], %s602
          %s604 = sand.u32 %s132, 1
          %s605 = smul.addr %s604, 8
          %s606 = scalar_lea.vmem [#allocation10], %s605
          %608 = dma.done %s603, 128
        $region72: #{tpu_custom_call.1} parent=67 // pred_fallthru
          _
        // Predicated region
        $region73: #{tpu_custom_call.1} parent=67 // pred_check
          %p609 = pneg %p173
        $region74: #{tpu_custom_call.1} parent=67 // pred_check_branch
          %611 = sbr.rel (%p609) target = $region76
        $region75: #{tpu_custom_call.1} parent=67 // pred_region
          %s612 = sand.u32 %s30, 1
          %s613 = scalar_lea.sflag [#allocation12], %s612
          %s614 = sand.u32 %s158, 1
          %s615 = scalar_lea.vmem [#allocation11], %s614
          %617 = dma.done %s613, 16
        $region76: #{tpu_custom_call.1} parent=67 // pred_fallthru
          _
        // Predicated region
        $region77: #{tpu_custom_call.1} parent=67 // pred_check
          %p618 = pneg %p199
        $region78: #{tpu_custom_call.1} parent=67 // pred_check_branch
          %620 = sbr.rel (%p618) target = $region80
        $region79: #{tpu_custom_call.1} parent=67 // pred_region
          %s621 = sand.u32 %s30, 1
          %s622 = scalar_lea.sflag [#allocation12], %s621
          %s623 = sand.u32 %s184, 1
          %s624 = scalar_lea.vmem [#allocation13], %s623
          %626 = dma.done %s622, 16
        $region80: #{tpu_custom_call.1} parent=67 // pred_fallthru
          _
      $region68: #{tpu_custom_call.1} parent=5 // pred_fallthru
        _
    $region6: #{tpu_custom_call.1} parent=1 // loop_footer
      %s28 = sadd.s32 1, %s24
    $region7: #{tpu_custom_call.1} parent=1 // loop_footer_branch
      %23 = sbr.rel target = $region3
    $region8: #{tpu_custom_call.1} parent=1 // loop_exit
      _
    %627 = vsyncpa [#allocation5], 1
    %s628 = scalar_lea.sflag [#allocation5], 1
    %629 = vsyncpa %s628, 1
    %630 = vsyncpa [#allocation8], 1
    %s631 = scalar_lea.sflag [#allocation8], 1
    %632 = vsyncpa %s631, 1
    %633 = vsyncpa [#allocation6], 1
    %s634 = scalar_lea.sflag [#allocation6], 1
    %635 = vsyncpa %s634, 1
    %636 = vsyncpa [#allocation12], 1
    %s637 = scalar_lea.sflag [#allocation12], 1
    %638 = vsyncpa %s637, 1

</llo_original>
